<compile_context>
chip_gen: v7x
topology: tpu7x:2x2x1
jax: 0.10.0
libtpu: 0.0.40
codegen_flags: <defaults>
</compile_context>

<pallas_src>
import functools
import math

import jax
import jax.numpy as jnp
from jax.experimental import pallas as pl
from jax.experimental.pallas import tpu as pltpu


def _make_pe(max_len: int, d_model: int) -> jnp.ndarray:
    """Sinusoidal positional-encoding buffer, shape (max_len, d_model) f32.

    Same contents as the PyTorch module's `pe` buffer (which torch reshapes to
    (max_len, 1, d_model)); the batch broadcast is done inside the kernel.
    """
    position = jnp.arange(0, max_len, dtype=jnp.float32)[:, None]            # (L, 1)
    div_term = jnp.exp(
        jnp.arange(0, d_model, 2, dtype=jnp.float32) * (-math.log(10000.0) / d_model)
    )                                                                         # (ceil(D/2),)
    angles = position * div_term                                              # (L, ceil(D/2))
    pe = jnp.zeros((max_len, d_model), dtype=jnp.float32)
    pe = pe.at[:, 0::2].set(jnp.sin(angles))
    if d_model % 2 != 0:
        pe = pe.at[:, 1::2].set(jnp.cos(angles)[:, :-1])
    else:
        pe = pe.at[:, 1::2].set(jnp.cos(angles))
    return pe


def _pe_kernel(x_ref, pe_ref, o_ref, *, scale, batch):
    # x_ref : (ts, batch * d_model)  lane-dense block in VMEM (pipelined).
    # pe_ref: (ts, d_model)          matching positional-encoding block.
    # out[s, b*D + d] = x[s, b*D + d] * scale + pe[s, d]
    pe = pe_ref[...].astype(jnp.float32)                         # (ts, D)
    if batch > 1:
        # Repeat pe along the lane axis to match the folded (B*D) lane dim.
        pe = jnp.tile(pe, (1, batch))                            # (ts, B*D)
    x = x_ref[...].astype(jnp.float32)
    o_ref[...] = (x * scale + pe).astype(o_ref.dtype)


def _choose_tile(seq_len: int, row_bytes: int, target_bytes: int) -> int:
    """Rows per block: ~target_bytes per block, multiple of 8 (sublane tile)."""
    if seq_len <= 8 or seq_len * row_bytes <= target_bytes:
        return seq_len                                    # single full block
    max_rows = max(8, (target_bytes // max(row_bytes, 1)) // 8 * 8)
    max_rows = min(max_rows, seq_len // 8 * 8)
    # Prefer a tile that evenly divides seq_len (no partial last block).
    for ts in range(max_rows, 7, -8):
        if seq_len % ts == 0:
            return ts
    return max_rows                                       # partial last block (masked)


def positional_encoding(
    x: jnp.ndarray,
    pe: jnp.ndarray,
    d_model: int,
    *,
    target_block_bytes: int = 2 << 20,
) -> jnp.ndarray:
    """x: (seq_len, batch, d_model); pe: (max_len, d_model) float32."""
    seq_len, batch, dm = x.shape
    assert dm == d_model
    assert pe.shape[0] >= seq_len and pe.shape[1] == d_model
    scale = math.sqrt(d_model)

    # Lane-dense 2-D view of x / out: (S, B*D).  Free reshape (merges trailing
    # dims of the row-major array); undone after the kernel.
    lanes = batch * d_model
    x2 = x.reshape(seq_len, lanes)

    row_bytes = lanes * x.dtype.itemsize
    ts = _choose_tile(seq_len, row_bytes, target_block_bytes)
    grid = pl.cdiv(seq_len, ts)

    # pe restricted to the rows actually used; same first-dim extent as x/out
    # so all three BlockSpecs get identical partial-block boundary handling.
    pe_slice = pe[:seq_len].astype(jnp.float32)

    kernel = functools.partial(_pe_kernel, scale=scale, batch=batch)

    out2 = pl.pallas_call(
        kernel,
        out_shape=jax.ShapeDtypeStruct((seq_len, lanes), x.dtype),
        grid_spec=pl.GridSpec(
            grid=(grid,),
            in_specs=[
                # x: tiled over seq_len, double-buffered by Pallas.
                pl.BlockSpec((ts, lanes), lambda i: (i, 0)),
                # pe: same seq tiling; tiny pipelined DMAs, no HBM broadcast.
                pl.BlockSpec((ts, d_model), lambda i: (i, 0)),
            ],
            out_specs=pl.BlockSpec((ts, lanes), lambda i: (i, 0)),
        ),
        compiler_params=pltpu.CompilerParams(
            # Elementwise, no reduction axis: every output block written once.
            dimension_semantics=("parallel",),
        ),
    )(x2, pe_slice)

    return out2.reshape(seq_len, batch, d_model)


if __name__ == "__main__":
    # --- small shape implied by the module: (seq_len, batch, d_model) ---
    d_model, max_len, seq_len, batch = 32, 300, 8, 2
    key = jax.random.PRNGKey(0)
    x = jax.random.normal(key, (seq_len, batch, d_model), dtype=jnp.float32)
    pe = _make_pe(max_len, d_model)

    out = jax.block_until_ready(positional_encoding(x, pe, d_model))
    ref = x * math.sqrt(d_model) + pe[:seq_len][:, None, :]
    assert out.shape == (seq_len, batch, d_model)
    assert jnp.allclose(out, ref, atol=1e-5, rtol=1e-5)

    # --- larger shape: exercises the multi-block, pipelined path (grid > 1) ---
    d_model2, seq2, batch2 = 128, 256, 4
    x2 = jax.random.normal(jax.random.PRNGKey(0), (seq2, batch2, d_model2),
                           dtype=jnp.float32)
    pe2 = _make_pe(max_len, d_model2)
    out2 = jax.block_until_ready(
        positional_encoding(x2, pe2, d_model2, target_block_bytes=64 * 1024)
    )
    ref2 = x2 * math.sqrt(d_model2) + pe2[:seq2][:, None, :]
    assert jnp.allclose(out2, ref2, atol=1e-4, rtol=1e-5)

    # --- ragged seq_len (not a multiple of the tile): partial last block ---
    d_model3, seq3, batch3 = 64, 250, 2
    x3 = jax.random.normal(jax.random.PRNGKey(0), (seq3, batch3, d_model3),
                           dtype=jnp.float32)
    pe3 = _make_pe(max_len, d_model3)
    out3 = jax.block_until_ready(
        positional_encoding(x3, pe3, d_model3, target_block_bytes=16 * 1024)
    )
    ref3 = x3 * math.sqrt(d_model3) + pe3[:seq3][:, None, :]
    assert jnp.allclose(out3, ref3, atol=1e-4, rtol=1e-5)

    print("KERNEL_OK")
</pallas_src>

<mosaic_0001>
module attributes {stable_mosaic.version = 11 : i64} {
  func.func @_pe_kernel(%arg0: i32, %arg1: memref<8x64xf32, #tpu.memory_space<vmem>>, %arg2: memref<8x32xf32, #tpu.memory_space<vmem>>, %arg3: memref<8x64xf32, #tpu.memory_space<vmem>>) attributes {dimension_semantics = [#tpu.dimension_semantics<parallel>], iteration_bounds = array<i64: 1>, scalar_prefetch = 0 : i64, scratch_operands = 0 : i64, tpu.core_type = #tpu.core_type<tc>, window_params = [{transform_indices = @transform_0, window_bounds = array<i64: 8, 64>}, {transform_indices = @transform_1, window_bounds = array<i64: 8, 32>}, {transform_indices = @transform_2, window_bounds = array<i64: 8, 64>}]} {
    %c0 = arith.constant 0 : index
    %c0_0 = arith.constant 0 : index
    %0 = vector.load %arg2[%c0, %c0_0] : memref<8x32xf32, #tpu.memory_space<vmem>>, vector<8x32xf32>
    %1 = tpu.concatenate %0, %0 in 1 : vector<8x32xf32>, vector<8x32xf32> -> vector<8x64xf32>
    %c0_1 = arith.constant 0 : index
    %c0_2 = arith.constant 0 : index
    %2 = vector.load %arg1[%c0_1, %c0_2] : memref<8x64xf32, #tpu.memory_space<vmem>>, vector<8x64xf32>
    %cst = arith.constant 5.65685415 : f32
    %3 = vector.broadcast %cst : f32 to vector<8x64xf32>
    %4 = arith.mulf %2, %3 : vector<8x64xf32>
    %5 = arith.addf %4, %1 : vector<8x64xf32>
    %c0_3 = arith.constant 0 : index
    %c0_4 = arith.constant 0 : index
    %6 = vector.load %arg3[%c0_3, %c0_4] : memref<8x64xf32, #tpu.memory_space<vmem>>, vector<8x64xf32>
    tpu.vector_store %arg3[%c0_3, %c0_4], %5 {strides = array<i32>} : memref<8x64xf32, #tpu.memory_space<vmem>>, vector<8x64xf32>,
    return
  }
  func.func @transform_0(%arg0: i32) -> (i32, i32) {
    %c0_i32 = arith.constant 0 : i32
    %c0_i32_0 = arith.constant 0 : i32
    return %arg0, %c0_i32 : i32, i32
  }
  func.func @transform_1(%arg0: i32) -> (i32, i32) {
    %c0_i32 = arith.constant 0 : i32
    %c0_i32_0 = arith.constant 0 : i32
    return %arg0, %c0_i32 : i32, i32
  }
  func.func @transform_2(%arg0: i32) -> (i32, i32) {
    %c0_i32 = arith.constant 0 : i32
    %c0_i32_0 = arith.constant 0 : i32
    return %arg0, %c0_i32 : i32, i32
  }
}

</mosaic_0001>

<llo_original>
// kernel: tpu_custom_call.1
$region0: #{tpu_custom_call.1}
  #allocation0 [shape = 'u32[]', space=smem, size = 0x4, offset = 0x4, fixed_abs, tag = 'smem constant byte address 0x4 - core index']
  #allocation1 [shape = 'u32[144,128]{1,0:T(1,128)}', space=vmem, size = 0x12000, scoped, tag = 'internal scratch']
  %s0 = inlined_call_operand.hbm [shape: f32[8,64], index: 0, kind: input, shape index: {}]
  %s1 = inlined_call_operand.hbm [shape: f32[8,32], index: 1, kind: input, shape index: {}]
  %s2 = inlined_call_operand.hbm [shape: f32[8,64], index: 2, kind: output, shape index: {}]
  %s3 = sld [smem:[#allocation0]]
  $region26: #{tpu_custom_call.1} parent=0
    _
  %s5 = ssub.s32 1, %s3
  %s6 = scalar_select 0, %s5, %s3
  $region1: #{tpu_custom_call.1} parent=0
    #allocation2 [shape = 'u8[4096]{0}', space=vmem, size = 0x1000, scoped, tag = 'input window, operand 0, single buffered']
    #allocation3 [shape = 's32[1]{0}', space=sflag, size = 0x4, scoped, tag = 'scoped memory for tpu_custom_call.1']
    #allocation4 [shape = 's32[1]{0}', space=sflag, size = 0x4, scoped, tag = 'scoped memory for tpu_custom_call.1']
    #allocation5 [shape = 'u8[4096]{0}', space=vmem, size = 0x1000, scoped, tag = 'input window, operand 1, single buffered']
    #allocation6 [shape = 's32[1]{0}', space=sflag, size = 0x4, scoped, tag = 'scoped memory for tpu_custom_call.1']
    #allocation7 [shape = 'u8[4096]{0}', space=vmem, size = 0x1000, scoped, tag = 'output window, operand 0, single buffered']
    %7 = vsyncpa [#allocation3], 0
    %8 = vsyncpa [#allocation6], 0
    %9 = vsyncpa [#allocation4], 0
    // Predicated region
    $region2: #{tpu_custom_call.1} parent=1 // pred_check
      _
    $region3: #{tpu_custom_call.1} parent=1 // pred_check_branch
      %11 = sbr.rel (0) target = $region5
    $region4: #{tpu_custom_call.1} parent=1 // pred_region
      %s13 = ssub.s32 128, 128
      %14 = vsyncadd [#allocation3], %s13
      %s16 = sshll.u32 [#allocation2], 4
      %s17 = int_to_ptr.vmem [resolvable:$true] %s16
      %19 = dma.hbm_to_vmem [thread:$0]  %s0, 128, %s17, [#allocation3]
    $region5: #{tpu_custom_call.1} parent=1 // pred_fallthru
      _
    // Predicated region
    $region6: #{tpu_custom_call.1} parent=1 // pred_check
      _
    $region7: #{tpu_custom_call.1} parent=1 // pred_check_branch
      %21 = sbr.rel (0) target = $region9
    $region8: #{tpu_custom_call.1} parent=1 // pred_region
      %s23 = ssub.s32 128, 128
      %24 = vsyncadd [#allocation6], %s23
      %s26 = sshll.u32 [#allocation5], 4
      %s27 = int_to_ptr.vmem [resolvable:$true] %s26
      %29 = dma.hbm_to_vmem [thread:$0]  %s1, 128, %s27, [#allocation6]
    $region9: #{tpu_custom_call.1} parent=1 // pred_fallthru
      _
    // Predicated region
    $region10: #{tpu_custom_call.1} parent=1 // pred_check
      _
    $region11: #{tpu_custom_call.1} parent=1 // pred_check_branch
      %31 = sbr.rel (0) target = $region13
    $region12: #{tpu_custom_call.1} parent=1 // pred_region
      %32 = dma.done [#allocation3], 128
    $region13: #{tpu_custom_call.1} parent=1 // pred_fallthru
      _
    // Predicated region
    $region14: #{tpu_custom_call.1} parent=1 // pred_check
      _
    $region15: #{tpu_custom_call.1} parent=1 // pred_check_branch
      %34 = sbr.rel (0) target = $region17
    $region16: #{tpu_custom_call.1} parent=1 // pred_region
      %35 = dma.done [#allocation6], 128
    $region17: #{tpu_custom_call.1} parent=1 // pred_fallthru
      _
    %v36 = vld [vmem:[#allocation5] sm:$0xff]
    %38 = vrot.lane.b32.xlu0 %v36, 32
    %v39 = vpop.permute.xlu0 %38
    %vm41 = vcmask 261120
    %v42 = vsel %vm41, %v36, %v39
    %v43 = vld [vmem:[#allocation2] sm:$0xff]
    %v44 = vmul.f32 %v43, 5.656854
    %v45 = vadd.f32 %v44, %v42
    %vm46 = vcmask 523264
    %47 = vst.msk [vmem:[#allocation7] sm:$0xff] %vm46, %v45
    // Predicated region
    $region18: #{tpu_custom_call.1} parent=1 // pred_check
      _
    $region19: #{tpu_custom_call.1} parent=1 // pred_check_branch
      %49 = sbr.rel (0) target = $region21
    $region20: #{tpu_custom_call.1} parent=1 // pred_region
      %s51 = ssub.s32 128, 128
      %52 = vsyncadd [#allocation4], %s51
      %s54 = sshll.u32 [#allocation7], 4
      %s55 = int_to_ptr.vmem [resolvable:$true] %s54
      %57 = dma.vmem_to_hbm [thread:$0]  %s55, 128, %s2, [#allocation4]
    $region21: #{tpu_custom_call.1} parent=1 // pred_fallthru
      _
    // Predicated region
    $region22: #{tpu_custom_call.1} parent=1 // pred_check
      _
    $region23: #{tpu_custom_call.1} parent=1 // pred_check_branch
      %59 = sbr.rel (0) target = $region25
    $region24: #{tpu_custom_call.1} parent=1 // pred_region
      %60 = dma.done [#allocation4], 128
    $region25: #{tpu_custom_call.1} parent=1 // pred_fallthru
      _
    %61 = vsyncpa [#allocation3], 1
    %62 = vsyncpa [#allocation6], 1
    %63 = vsyncpa [#allocation4], 1

</llo_original>
